<compile_context>
chip_gen: v5e
topology: v5e:2x2
jax: 0.10.0
libtpu: 0.0.40
codegen_flags: <defaults>
</compile_context>

<pallas_src>
import math
import functools

import jax
import jax.numpy as jnp
from jax.experimental import pallas as pl
from jax.experimental.pallas import tpu as pltpu


def _pos_enc_kernel(x_ref, o_ref, *, d_model, p, train, seed):
    # x_ref / o_ref: (ts, B*D) tile of the flattened (S, B*D) input.
    ts, BD = x_ref.shape
    seq_off = pl.program_id(0) * ts  # global sequence offset of this tile

    # ---- lane-only frequency table: (1, B*D) ----
    lane = jax.lax.broadcasted_iota(jnp.int32, (1, BD), 1)
    dim = lane % d_model                                     # feature index
    k = (dim >> 1).astype(jnp.float32)                       # dim // 2
    odd = (dim & 1) == 1                                     # dim % 2 == 1
    # inv_freq[k] = exp(2k * (-ln(10000)/d_model))
    inv_freq = jnp.exp(k * jnp.float32(-2.0 * math.log(10000.0) / d_model))

    # Position index (int32 iota for exactness, cast to f32 for the product).
    pos = (jax.lax.broadcasted_iota(jnp.int32, (ts, 1), 0)
           + seq_off).astype(jnp.float32)

    angle = pos * inv_freq                                   # (ts, B*D) f32
    # Direct sin / cos per parity: EUP has slack; keeps long-seq f32 accuracy.
    pe = jnp.where(odd, jnp.cos(angle), jnp.sin(angle))

    # Add in f32 (PyTorch's pe buffer is f32); cast once at the store.
    y = x_ref[...].astype(jnp.float32) + pe

    if train and p > 0.0:
        # Training-mode inverted dropout (nn.Dropout semantics).
        # NOTE: the mask depends on the tiling (seed + program_id), so sweeping
        # seq_tile changes the random mask -- not a correctness issue.
        pltpu.prng_seed(seed + pl.program_id(0))
        bits = pltpu.bitcast(pltpu.prng_random_bits((ts, BD)), jnp.uint32)
        if p >= 1.0:
            y = jnp.zeros_like(y)
        else:
            # drop when u32 < p * 2^32 (clamped so p -> 1 does not wrap to 0)
            thresh = jnp.uint32(min(int(round(p * 4294967296.0)), 4294967295))
            keep = bits >= thresh
            y = jnp.where(keep, y * jnp.float32(1.0 / (1.0 - p)), jnp.float32(0.0))

    o_ref[...] = y.astype(o_ref.dtype)


def _default_seq_tile(S, BD, itemsize):
    # Sublane packing granularity: 8 rows for 32-bit, 16 for 16-bit, 32 for 8-bit.
    sub = 8 * max(1, 4 // max(1, itemsize))
    # Target ~2 MiB per x tile: in + out double-buffered ~= 8 MiB, comfortably
    # inside the scoped-VMEM default on v5e (16 MiB), v6e (32 MiB), v7x (32 MiB
    # scoped / 64 MiB physical) while amortizing the ~0.35 us/step grid overhead.
    target_bytes = 2 << 20
    rows = (target_bytes // max(1, BD * itemsize)) // sub * sub
    rows = max(sub, rows)
    # Guarantee >= 2 grid steps when the array allows it so the "parallel" grid
    # axis shards across both v7x TensorCores.
    if S >= 2 * sub:
        half = (((S + 1) // 2) + sub - 1) // sub * sub
        rows = min(rows, half)
    if rows >= S:
        return S  # single full-extent block (always layout-legal)
    return rows


def positional_encoding(x, *, dropout_p=0.1, train=False, seed=0, seq_tile=None):
    """x: (S, B, D) array. Returns x + pe[:S] (with inverted dropout if train)."""
    S, B, D = x.shape
    BD = B * D
    x2 = x.reshape(S, BD)  # lane-dense 2D view; free for a contiguous array

    itemsize = x.dtype.itemsize
    ts = _default_seq_tile(S, BD, itemsize) if seq_tile is None else seq_tile
    ts = min(ts, S)
    grid = (pl.cdiv(S, ts),)  # ragged last block OK: OOB stores are masked

    kernel = functools.partial(
        _pos_enc_kernel, d_model=D, p=float(dropout_p), train=train, seed=seed
    )

    out2 = pl.pallas_call(
        kernel,
        out_shape=jax.ShapeDtypeStruct((S, BD), x.dtype),
        grid=grid,
        in_specs=[pl.BlockSpec((ts, BD), lambda i: (i, 0))],
        out_specs=pl.BlockSpec((ts, BD), lambda i: (i, 0)),
        input_output_aliases={0: 0},  # donate x (shape/dtype-preserving op)
        compiler_params=pltpu.CompilerParams(
            dimension_semantics=("parallel",),
            vmem_limit_bytes=32 * 1024 * 1024,
        ),
    )(x2)
    return out2.reshape(S, B, D)


def _reference(x):
    # Pure-JAX reference of the PyTorch forward (eval mode: dropout = identity).
    S, B, D = x.shape
    position = jnp.arange(S, dtype=jnp.float32)[:, None]                  # (S, 1)
    div_term = jnp.exp(jnp.arange(0, D, 2, dtype=jnp.float32)
                       * (-math.log(10000.0) / D))                        # (D/2,)
    pe = jnp.zeros((S, D), jnp.float32)
    pe = pe.at[:, 0::2].set(jnp.sin(position * div_term))
    pe = pe.at[:, 1::2].set(jnp.cos(position * div_term))
    return x + pe[:, None, :]                                             # (S, B, D)


if __name__ == "__main__":
    S, B, D = 8, 2, 32  # seq=8, batch=2, d_model=32
    key = jax.random.PRNGKey(0)
    x = jax.random.normal(key, (S, B, D), dtype=jnp.float32)

    # Eval-mode forward (nn.Dropout is identity in eval); deterministic.
    out = positional_encoding(x, dropout_p=0.1, train=False)
    out = jax.block_until_ready(out)

    ref = _reference(x)
    assert out.shape == (S, B, D)
    assert jnp.allclose(out, ref, atol=1e-4, rtol=1e-5), "mismatch vs reference"

    print("KERNEL_OK")
</pallas_src>

<mosaic_0001>
module attributes {stable_mosaic.version = 11 : i64} {
  func.func @_pos_enc_kernel(%arg0: i32, %arg1: memref<8x64xf32, #tpu.memory_space<vmem>>, %arg2: memref<8x64xf32, #tpu.memory_space<vmem>>) attributes {dimension_semantics = [#tpu.dimension_semantics<parallel>], iteration_bounds = array<i64: 1>, scalar_prefetch = 0 : i64, scratch_operands = 0 : i64, tpu.core_type = #tpu.core_type<tc>, window_params = [{transform_indices = @transform_0, window_bounds = array<i64: 8, 64>}, {transform_indices = @transform_1, window_bounds = array<i64: 8, 64>}]} {
    %c8_i32 = arith.constant 8 : i32
    %0 = arith.muli %arg0, %c8_i32 : i32
    %1 = tpu.iota {dimensions = array<i32: 1>} : vector<1x64xi32>
    %c32_i32 = arith.constant 32 : i32
    %c0_i32 = arith.constant 0 : i32
    %2 = arith.cmpi eq, %c32_i32, %c0_i32 : i32
    %c1_i32 = arith.constant 1 : i32
    %3 = arith.select %2, %c1_i32, %c32_i32 : i32
    %4 = vector.broadcast %3 : i32 to vector<1x64xi32>
    %5 = arith.remsi %1, %4 : vector<1x64xi32>
    %c0_i32_0 = arith.constant 0 : i32
    %6 = vector.broadcast %c0_i32_0 : i32 to vector<1x64xi32>
    %7 = arith.cmpi ne, %5, %6 : vector<1x64xi32>
    %c0_i32_1 = arith.constant 0 : i32
    %8 = vector.broadcast %c0_i32_1 : i32 to vector<1x64xi32>
    %9 = arith.cmpi slt, %5, %8 : vector<1x64xi32>
    %c0_i32_2 = arith.constant 0 : i32
    %10 = arith.cmpi slt, %3, %c0_i32_2 : i32
    %11 = vector.broadcast %10 : i1 to vector<1x64xi1>
    %12 = vector.broadcast %11 : vector<1x64xi1> to vector<1x64xi1>
    %13 = arith.xori %9, %12 : vector<1x64xi1>
    %14 = arith.andi %13, %7 : vector<1x64xi1>
    %15 = vector.broadcast %3 : i32 to vector<1x64xi32>
    %16 = arith.addi %5, %15 : vector<1x64xi32>
    %17 = arith.select %14, %16, %5 : vector<1x64xi1>, vector<1x64xi32>
    %c1_i32_3 = arith.constant 1 : i32
    %18 = vector.broadcast %c1_i32_3 : i32 to vector<1x64xi32>
    %19 = arith.shrsi %17, %18 : vector<1x64xi32>
    %20 = arith.sitofp %19 : vector<1x64xi32> to vector<1x64xf32>
    %c1_i32_4 = arith.constant 1 : i32
    %21 = vector.broadcast %c1_i32_4 : i32 to vector<1x64xi32>
    %22 = arith.andi %17, %21 : vector<1x64xi32>
    %c1_i32_5 = arith.constant 1 : i32
    %23 = vector.broadcast %c1_i32_5 : i32 to vector<1x64xi32>
    %24 = arith.cmpi eq, %22, %23 : vector<1x64xi32>
    %cst = arith.constant -0.575646281 : f32
    %25 = vector.broadcast %cst : f32 to vector<1x64xf32>
    %26 = arith.mulf %20, %25 : vector<1x64xf32>
    %27 = math.exp %26 : vector<1x64xf32>
    %28 = tpu.iota {dimensions = array<i32: 0>} : vector<8x1xi32>
    %29 = vector.broadcast %0 : i32 to vector<8x1xi32>
    %30 = arith.addi %28, %29 : vector<8x1xi32>
    %31 = arith.sitofp %30 : vector<8x1xi32> to vector<8x1xf32>
    %32 = vector.broadcast %31 : vector<8x1xf32> to vector<8x64xf32>
    %33 = vector.broadcast %27 : vector<1x64xf32> to vector<8x64xf32>
    %34 = arith.mulf %32, %33 : vector<8x64xf32>
    %35 = math.cos %34 : vector<8x64xf32>
    %36 = math.sin %34 : vector<8x64xf32>
    %37 = vector.shape_cast %24 : vector<1x64xi1> to vector<1x64xi1>
    %38 = vector.broadcast %37 : vector<1x64xi1> to vector<8x64xi1>
    %39 = arith.select %38, %35, %36 : vector<8x64xi1>, vector<8x64xf32>
    %c0 = arith.constant 0 : index
    %c0_6 = arith.constant 0 : index
    %40 = vector.load %arg1[%c0, %c0_6] : memref<8x64xf32, #tpu.memory_space<vmem>>, vector<8x64xf32>
    %41 = arith.addf %40, %39 : vector<8x64xf32>
    %c0_7 = arith.constant 0 : index
    %c0_8 = arith.constant 0 : index
    %42 = vector.load %arg2[%c0_7, %c0_8] : memref<8x64xf32, #tpu.memory_space<vmem>>, vector<8x64xf32>
    tpu.vector_store %arg2[%c0_7, %c0_8], %41 {strides = array<i32>} : memref<8x64xf32, #tpu.memory_space<vmem>>, vector<8x64xf32>,
    return
  }
  func.func @transform_0(%arg0: i32) -> (i32, i32) {
    %c0_i32 = arith.constant 0 : i32
    %c0_i32_0 = arith.constant 0 : i32
    return %arg0, %c0_i32 : i32, i32
  }
  func.func @transform_1(%arg0: i32) -> (i32, i32) {
    %c0_i32 = arith.constant 0 : i32
    %c0_i32_0 = arith.constant 0 : i32
    return %arg0, %c0_i32 : i32, i32
  }
}

</mosaic_0001>

<llo_original>
// kernel: tpu_custom_call.1
$region0: #{tpu_custom_call.1}
  #allocation0 [shape = 'u32[]', space=smem, size = 0x4, offset = 0x4, fixed_abs, tag = 'smem constant byte address 0x4 - core index']
  #allocation1 [shape = 'u32[72,128]{1,0:T(1,128)}', space=vmem, size = 0x9000, scoped, tag = 'internal scratch']
  %s0 = inlined_call_operand.hbm [shape: f32[8,64], index: 0, kind: input, shape index: {}, may-alias: {0,1}]
  %s1 = inlined_call_operand.hbm [shape: f32[8,64], index: 1, kind: output, shape index: {}, may-alias: {0,1}]
  %s2 = sld [smem:[#allocation0]]
  $region18: #{tpu_custom_call.1} parent=0
    _
  %s4 = ssub.s32 1, %s2
  %s5 = scalar_select 0, %s4, %s2
  $region1: #{tpu_custom_call.1} parent=0
    #allocation2 [shape = 'u8[4096]{0}', space=vmem, size = 0x1000, scoped, tag = 'input window, operand 0, single buffered']
    #allocation3 [shape = 's32[1]{0}', space=sflag, size = 0x4, scoped, tag = 'scoped memory for tpu_custom_call.1']
    #allocation4 [shape = 's32[1]{0}', space=sflag, size = 0x4, scoped, tag = 'scoped memory for tpu_custom_call.1']
    #allocation5 [shape = 'u8[4096]{0}', space=vmem, size = 0x1000, scoped, tag = 'output window, operand 0, single buffered']
    %6 = vsyncpa [#allocation3], 0
    %7 = vsyncpa [#allocation4], 0
    // Predicated region
    $region2: #{tpu_custom_call.1} parent=1 // pred_check
      _
    $region3: #{tpu_custom_call.1} parent=1 // pred_check_branch
      %9 = sbr.rel (0) target = $region5
    $region4: #{tpu_custom_call.1} parent=1 // pred_region
      %11 = vsyncadd [#allocation3], 0
      %s13 = sshll.u32 %s0, 4
      %s14 = int_to_ptr.hbm [resolvable:$true] %s13
      %s15 = sshll.u32 [#allocation2], 4
      %s16 = int_to_ptr.vmem [resolvable:$true] %s15
      %18 = dma.hbm_to_vmem [thread:$0]  %s14, 128, %s16, [#allocation3]
    $region5: #{tpu_custom_call.1} parent=1 // pred_fallthru
      _
    // Predicated region
    $region6: #{tpu_custom_call.1} parent=1 // pred_check
      _
    $region7: #{tpu_custom_call.1} parent=1 // pred_check_branch
      %20 = sbr.rel (0) target = $region9
    $region8: #{tpu_custom_call.1} parent=1 // pred_region
      %22 = dma.done [#allocation3], 128
    $region9: #{tpu_custom_call.1} parent=1 // pred_fallthru
      _
    %s23 = smul.u32 0, 8
    %v24 = vlaneseq
    %v25 = vand.u32 %v24, 127
    %vm26 = vcmp.lt.s32.totalorder %v25, 0
    %v27 = vsub.s32 0, %v25
    %v28 = vsel %vm26, %v27, %v25
    %v29 = vshrl.u32 %v28, 5
    %v30 = vand.u32 %v28, 31
    %v31 = vsub.s32 0, %v30
    %v32 = vsel %vm26, %v31, %v30
    %vm33 = vcmp.ne.s32.totalorder %v32, 0
    %vm34 = vcmp.lt.s32.totalorder %v32, 0
    %vm35 = vmand %vm34, %vm33
    %v36 = vadd.s32 %v32, 32
    %v37 = vsel %vm35, %v36, %v32
    %v38 = vshra.s32 %v37, 1
    %v39 = vcvt.s32.f32 %v38
    %v40 = vand.u32 %v37, 1
    %vm41 = vcmp.eq.s32.totalorder %v40, 1
    %v42 = vmul.f32 %v39, -0.5756463
    %v43 = vmul.f32 %v42, 1.442695
    %v44 = vpow.pop %v43
    %v45 = vlaneseq
    %v46 = vshrl.u32 %v45, 7
    %v47 = vstv %s23
    %v48 = vadd.s32 %v46, %v47
    %v49 = vcvt.s32.f32 %v48
    %v50 = vmul.f32 %v49, %v44
    %v51 = vand.u32 2147483647, %v50
    %vm52 = vcmp.le.f32.partialorder %v51, 0.7853982
    %vm53 = vcmp.lt.s32.totalorder %v50, 0
    %v54 = vand.u32 %v50, 2139095040
    %v55 = vshrl.u32 %v54, 23
    %v56 = vsub.s32 %v55, 127
    %v57 = vand.u32 2147483647, %v50
    %v58 = vand.u32 %v57, 8388607
    %v59 = vor.u32 %v58, 8388608
    %v60 = vsub.s32 0, %v59
    %v61 = vadd.s32 %v56, 1
    %vm62 = vcmp.gt.s32.totalorder %v61, 0
    %v63 = vsel %vm62, %v61, 0
    %v64 = vshrl.u32 %v63, 5
    %v65 = vand.u32 %v63, 31
    %v66 = vsub.s32 32, %v65
    %v67 = vshrl.u32 683565275, %v66
    %v68 = vshll.u32 683565275, %v65
    %v69 = vshrl.u32 2475754826, %v66
    %v70 = vor.u32 %v68, %v69
    %v71 = vshll.u32 2475754826, %v65
    %v72 = vshrl.u32 2131351028, %v66
    %v73 = vor.u32 %v71, %v72
    %v74 = vshll.u32 2131351028, %v65
    %v75 = vshrl.u32 2102212464, %v66
    %v76 = vor.u32 %v74, %v75
    %v77 = vshll.u32 2102212464, %v65
    %v78 = vshrl.u32 920167782, %v66
    %v79 = vor.u32 %v77, %v78
    %v80 = vshll.u32 920167782, %v65
    %v81 = vshrl.u32 1326507024, %v66
    %v82 = vor.u32 %v80, %v81
    %vm83 = vcmp.lt.s32.totalorder %v64, 1
    %vm84 = vcmp.lt.s32.totalorder %v64, 2
    %vm85 = vcmp.lt.s32.totalorder %v64, 3
    %vm86 = vcmp.lt.s32.totalorder %v64, 4
    %v87 = vsel %vm83, %v67, %v70
    %v88 = vsel %vm86, %v76, 2102212464
    %v89 = vsel %vm85, %v73, %v88
    %v90 = vsel %vm84, %v87, %v89
    %v91 = vsel %vm83, %v70, %v73
    %v92 = vsel %vm86, %v79, 920167782
    %v93 = vsel %vm85, %v76, %v92
    %v94 = vsel %vm84, %v91, %v93
    %v95 = vsel %vm83, %v73, %v76
    %v96 = vsel %vm86, %v82, 1326507024
    %v97 = vsel %vm85, %v79, %v96
    %v98 = vsel %vm84, %v95, %v97
    %v99 = vshll.u32 %v59, 8
    %v100 = vand.u32 %v99, 65535
    %v101 = vshrl.u32 %v99, 16
    %v102 = vand.u32 %v98, 65535
    %v103 = vshrl.u32 %v98, 16
    %v104 = vmul.u32 %v100, %v102
    %v105 = vmul.u32 %v100, %v103
    %v106 = vmul.u32 %v101, %v102
    %v107 = vmul.u32 %v101, %v103
    %v108 = vshll.u32 %v105, 16
    %v109 = vshrl.u32 %v105, 16
    %v110 = vshll.u32 %v106, 16
    %v111 = vshrl.u32 %v106, 16
    %vm112 = vc.u32 %v104, %v108
    %v113 = vsel %vm112, 1, 0
    %v114 = vadd.s32 %v104, %v108
    %v115 = vadd.s32 %v107, %v113
    %vm116 = vc.u32 %v114, %v110
    %v117 = vsel %vm116, 1, 0
    %v118 = vadd.s32 %v114, %v110
    %v119 = vadd.s32 %v115, %v117
    %v120 = vadd.s32 %v119, %v109
    %v121 = vadd.s32 %v120, %v111
    %v122 = vand.u32 %v99, 65535
    %v123 = vshrl.u32 %v99, 16
    %v124 = vand.u32 %v94, 65535
    %v125 = vshrl.u32 %v94, 16
    %v126 = vmul.u32 %v122, %v124
    %v127 = vmul.u32 %v122, %v125
    %v128 = vmul.u32 %v123, %v124
    %v129 = vmul.u32 %v123, %v125
    %v130 = vshll.u32 %v127, 16
    %v131 = vshrl.u32 %v127, 16
    %v132 = vshll.u32 %v128, 16
    %v133 = vshrl.u32 %v128, 16
    %vm134 = vc.u32 %v126, %v130
    %v135 = vsel %vm134, 1, 0
    %v136 = vadd.s32 %v126, %v130
    %v137 = vadd.s32 %v129, %v135
    %vm138 = vc.u32 %v136, %v132
    %v139 = vsel %vm138, 1, 0
    %v140 = vadd.s32 %v136, %v132
    %v141 = vadd.s32 %v137, %v139
    %v142 = vadd.s32 %v141, %v131
    %v143 = vadd.s32 %v142, %v133
    %v144 = vmul.u32 %v99, %v90
    %v145 = vadd.s32 %v121, %v140
    %vm146 = vc.u32 %v121, %v140
    %v147 = vadd.s32 %v143, 1
    %v148 = vsel %vm146, %v147, %v143
    %v149 = vadd.s32 %v144, %v148
    %v150 = vadd.s32 %v149, 536870912
    %v151 = vshrl.u32 %v150, 30
    %v152 = vshll.u32 %v151, 30
    %v153 = vsub.s32 %v149, %v152
    %vm154 = vcmp.lt.s32.totalorder %v153, 0
    %v155 = vsub.s32 0, %v153
    %v156 = vsel %vm154, %v155, %v153
    %v157 = vclz %v156
    %v158 = vsub.s32 %v157, 2
    %vm159 = vcmp.gt.s32.totalorder 0, %v158
    %v160 = vsel %vm159, 0, %v158
    %v161 = vsub.s32 32, %v160
    %v162 = vshll.u32 %v153, %v160
    %v163 = vshrl.u32 %v145, %v161
    %v164 = vor.u32 %v162, %v163
    %v165 = vsub.s32 4294967266, %v160
    %v166 = vadd.s32 %v165, 127
    %v167 = vshll.u32 %v166, 23
    %v168 = vor.u32 4788187, %v167
    %v169 = vand.u32 2147483647, %v168
    %v171 = vcvt.s32.f32 %v164
    %v172 = vmul.f32 %v171, %v169
    %v173 = vxor.u32 %v172, 2147483648
    %v174 = vsel %vm53, %v173, %v172
    %v175 = vsub.s32 4, %v151
    %v176 = vsel %vm53, %v175, %v151
    %v177 = vsel %vm52, %v50, %v174
    %v178 = vsel %vm52, 0, %v176
    %v179 = vmul.f32 %v177, %v177
    %v180 = vmul.f32 %v179, -0.001358992
    %v181 = vadd.f32 %v180, 0.041655596
    %v182 = vmul.f32 %v179, %v181
    %v183 = vadd.f32 %v182, -0.4999988
    %v184 = vmul.f32 %v179, %v183
    %v185 = vadd.f32 1.0, %v184
    %v186 = vmul.f32 %v177, %v177
    %v187 = vmul.f32 %v186, -0.00019511016
    %v188 = vadd.f32 %v187, 0.008332121
    %v189 = vmul.f32 %v186, %v188
    %v190 = vadd.f32 %v189, -0.16666654
    %v191 = vmul.f32 %v186, %v190
    %v192 = vadd.f32 %v191, 1.0
    %v193 = vmul.f32 %v192, %v177
    %vm194 = vweird.f32 %v50
    %v195 = vand.u32 %v178, 3
    %vm196 = vcmp.lt.s32.totalorder %v195, 2
    %vm197 = vcmp.eq.s32.totalorder %v195, 0
    %v198 = vxor.u32 %v193, 2147483648
    %v199 = vsel %vm197, %v185, %v198
    %vm200 = vcmp.eq.s32.totalorder %v195, 2
    %v201 = vxor.u32 %v185, 2147483648
    %v202 = vsel %vm200, %v201, %v193
    %v203 = vsel %vm196, %v199, %v202
    %v204 = vsel %vm194, nan, %v203
    %v205 = vand.u32 2147483647, %v50
    %vm206 = vcmp.le.f32.partialorder %v205, 0.7853982
    %vm207 = vcmp.lt.s32.totalorder %v50, 0
    %v208 = vand.u32 %v50, 2139095040
    %v209 = vshrl.u32 %v208, 23
    %v210 = vsub.s32 %v209, 127
    %v211 = vand.u32 2147483647, %v50
    %v212 = vand.u32 %v211, 8388607
    %v213 = vor.u32 %v212, 8388608
    %v214 = vsub.s32 0, %v213
    %v215 = vadd.s32 %v210, 1
    %vm216 = vcmp.gt.s32.totalorder %v215, 0
    %v217 = vsel %vm216, %v215, 0
    %v218 = vshrl.u32 %v217, 5
    %v219 = vand.u32 %v217, 31
    %v220 = vsub.s32 32, %v219
    %v221 = vshrl.u32 683565275, %v220
    %v222 = vshll.u32 683565275, %v219
    %v223 = vshrl.u32 2475754826, %v220
    %v224 = vor.u32 %v222, %v223
    %v225 = vshll.u32 2475754826, %v219
    %v226 = vshrl.u32 2131351028, %v220
    %v227 = vor.u32 %v225, %v226
    %v228 = vshll.u32 2131351028, %v219
    %v229 = vshrl.u32 2102212464, %v220
    %v230 = vor.u32 %v228, %v229
    %v231 = vshll.u32 2102212464, %v219
    %v232 = vshrl.u32 920167782, %v220
    %v233 = vor.u32 %v231, %v232
    %v234 = vshll.u32 920167782, %v219
    %v235 = vshrl.u32 1326507024, %v220
    %v236 = vor.u32 %v234, %v235
    %vm237 = vcmp.lt.s32.totalorder %v218, 1
    %vm238 = vcmp.lt.s32.totalorder %v218, 2
    %vm239 = vcmp.lt.s32.totalorder %v218, 3
    %vm240 = vcmp.lt.s32.totalorder %v218, 4
    %v241 = vsel %vm237, %v221, %v224
    %v242 = vsel %vm240, %v230, 2102212464
    %v243 = vsel %vm239, %v227, %v242
    %v244 = vsel %vm238, %v241, %v243
    %v245 = vsel %vm237, %v224, %v227
    %v246 = vsel %vm240, %v233, 920167782
    %v247 = vsel %vm239, %v230, %v246
    %v248 = vsel %vm238, %v245, %v247
    %v249 = vsel %vm237, %v227, %v230
    %v250 = vsel %vm240, %v236, 1326507024
    %v251 = vsel %vm239, %v233, %v250
    %v252 = vsel %vm238, %v249, %v251
    %v253 = vshll.u32 %v213, 8
    %v254 = vand.u32 %v253, 65535
    %v255 = vshrl.u32 %v253, 16
    %v256 = vand.u32 %v252, 65535
    %v257 = vshrl.u32 %v252, 16
    %v258 = vmul.u32 %v254, %v256
    %v259 = vmul.u32 %v254, %v257
    %v260 = vmul.u32 %v255, %v256
    %v261 = vmul.u32 %v255, %v257
    %v262 = vshll.u32 %v259, 16
    %v263 = vshrl.u32 %v259, 16
    %v264 = vshll.u32 %v260, 16
    %v265 = vshrl.u32 %v260, 16
    %vm266 = vc.u32 %v258, %v262
    %v267 = vsel %vm266, 1, 0
    %v268 = vadd.s32 %v258, %v262
    %v269 = vadd.s32 %v261, %v267
    %vm270 = vc.u32 %v268, %v264
    %v271 = vsel %vm270, 1, 0
    %v272 = vadd.s32 %v268, %v264
    %v273 = vadd.s32 %v269, %v271
    %v274 = vadd.s32 %v273, %v263
    %v275 = vadd.s32 %v274, %v265
    %v276 = vand.u32 %v253, 65535
    %v277 = vshrl.u32 %v253, 16
    %v278 = vand.u32 %v248, 65535
    %v279 = vshrl.u32 %v248, 16
    %v280 = vmul.u32 %v276, %v278
    %v281 = vmul.u32 %v276, %v279
    %v282 = vmul.u32 %v277, %v278
    %v283 = vmul.u32 %v277, %v279
    %v284 = vshll.u32 %v281, 16
    %v285 = vshrl.u32 %v281, 16
    %v286 = vshll.u32 %v282, 16
    %v287 = vshrl.u32 %v282, 16
    %vm288 = vc.u32 %v280, %v284
    %v289 = vsel %vm288, 1, 0
    %v290 = vadd.s32 %v280, %v284
    %v291 = vadd.s32 %v283, %v289
    %vm292 = vc.u32 %v290, %v286
    %v293 = vsel %vm292, 1, 0
    %v294 = vadd.s32 %v290, %v286
    %v295 = vadd.s32 %v291, %v293
    %v296 = vadd.s32 %v295, %v285
    %v297 = vadd.s32 %v296, %v287
    %v298 = vmul.u32 %v253, %v244
    %v299 = vadd.s32 %v275, %v294
    %vm300 = vc.u32 %v275, %v294
    %v301 = vadd.s32 %v297, 1
    %v302 = vsel %vm300, %v301, %v297
    %v303 = vadd.s32 %v298, %v302
    %v304 = vadd.s32 %v303, 536870912
    %v305 = vshrl.u32 %v304, 30
    %v306 = vshll.u32 %v305, 30
    %v307 = vsub.s32 %v303, %v306
    %vm308 = vcmp.lt.s32.totalorder %v307, 0
    %v309 = vsub.s32 0, %v307
    %v310 = vsel %vm308, %v309, %v307
    %v311 = vclz %v310
    %v312 = vsub.s32 %v311, 2
    %vm313 = vcmp.gt.s32.totalorder 0, %v312
    %v314 = vsel %vm313, 0, %v312
    %v315 = vsub.s32 32, %v314
    %v316 = vshll.u32 %v307, %v314
    %v317 = vshrl.u32 %v299, %v315
    %v318 = vor.u32 %v316, %v317
    %v319 = vsub.s32 4294967266, %v314
    %v320 = vadd.s32 %v319, 127
    %v321 = vshll.u32 %v320, 23
    %v322 = vor.u32 4788187, %v321
    %v323 = vand.u32 2147483647, %v322
    %v325 = vcvt.s32.f32 %v318
    %v326 = vmul.f32 %v325, %v323
    %v327 = vxor.u32 %v326, 2147483648
    %v328 = vsel %vm207, %v327, %v326
    %v329 = vsub.s32 4, %v305
    %v330 = vsel %vm207, %v329, %v305
    %v331 = vsel %vm206, %v50, %v328
    %v332 = vsel %vm206, 0, %v330
    %v333 = vmul.f32 %v331, %v331
    %v334 = vmul.f32 %v333, -0.001358992
    %v335 = vadd.f32 %v334, 0.041655596
    %v336 = vmul.f32 %v333, %v335
    %v337 = vadd.f32 %v336, -0.4999988
    %v338 = vmul.f32 %v333, %v337
    %v339 = vadd.f32 1.0, %v338
    %v340 = vmul.f32 %v331, %v331
    %v341 = vmul.f32 %v340, -0.00019511016
    %v342 = vadd.f32 %v341, 0.008332121
    %v343 = vmul.f32 %v340, %v342
    %v344 = vadd.f32 %v343, -0.16666654
    %v345 = vmul.f32 %v340, %v344
    %v346 = vadd.f32 %v345, 1.0
    %v347 = vmul.f32 %v346, %v331
    %vm348 = vweird.f32 %v50
    %v349 = vadd.s32 %v332, 3
    %v350 = vand.u32 %v349, 3
    %vm351 = vcmp.lt.s32.totalorder %v350, 2
    %vm352 = vcmp.eq.s32.totalorder %v350, 0
    %v353 = vxor.u32 %v347, 2147483648
    %v354 = vsel %vm352, %v339, %v353
    %vm355 = vcmp.eq.s32.totalorder %v350, 2
    %v356 = vxor.u32 %v339, 2147483648
    %v357 = vsel %vm355, %v356, %v347
    %v358 = vsel %vm351, %v354, %v357
    %v359 = vsel %vm348, nan, %v358
    %v360 = vsel %vm41, 1, 0
    %vm361 = vcmp.eq.s32.totalorder %v360, 1
    %v362 = vsel %vm361, %v204, %v359
    %v363 = vld [vmem:[#allocation2] sm:$0xff]
    %v364 = vadd.f32 %v363, %v362
    %vm365 = vcmask 523264
    %366 = vst.msk [vmem:[#allocation5] sm:$0xff] %vm365, %v364
    // Predicated region
    $region10: #{tpu_custom_call.1} parent=1 // pred_check
      _
    $region11: #{tpu_custom_call.1} parent=1 // pred_check_branch
      %368 = sbr.rel (0) target = $region13
    $region12: #{tpu_custom_call.1} parent=1 // pred_region
      %370 = vsyncadd [#allocation4], 0
      %s372 = sshll.u32 [#allocation5], 4
      %s373 = int_to_ptr.vmem [resolvable:$true] %s372
      %s374 = sshll.u32 %s1, 4
      %s375 = int_to_ptr.hbm [resolvable:$true] %s374
      %377 = dma.vmem_to_hbm [thread:$0]  %s373, 128, %s375, [#allocation4]
    $region13: #{tpu_custom_call.1} parent=1 // pred_fallthru
      _
    // Predicated region
    $region14: #{tpu_custom_call.1} parent=1 // pred_check
      _
    $region15: #{tpu_custom_call.1} parent=1 // pred_check_branch
      %379 = sbr.rel (0) target = $region17
    $region16: #{tpu_custom_call.1} parent=1 // pred_region
      %381 = dma.done [#allocation4], 128
    $region17: #{tpu_custom_call.1} parent=1 // pred_fallthru
      _
    %382 = vsyncpa [#allocation3], 1
    %383 = vsyncpa [#allocation4], 1

</llo_original>
